<compile_context>
chip_gen: v5e
topology: v5e:2x2
jax: 0.10.0
libtpu: 0.0.40
codegen_flags: <defaults>
</compile_context>

<pallas_src>
import jax
import jax.numpy as jnp
from jax.experimental import pallas as pl
from jax.experimental.pallas import tpu as pltpu

DROPOUT_P = 0.5
_DROP_THRESHOLD = int(round(DROPOUT_P * (1 << 32)))     # drop iff bits < threshold
_KEEP_SCALE = 1.0 / (1.0 - DROPOUT_P)                   # inverted-dropout scale


def _make_mcd_kernel(forward_passes: int, c_out: int):
    inv_t = 1.0 / float(forward_passes)
    # TODO(synk): torch.var with 1 sample is NaN; we guard the divisor instead.
    inv_tm1 = 1.0 / float(max(forward_passes - 1, 1))

    def mcd_kernel(bits_ref, x_ref, w_ref, b_ref, mean_ref, var_ref):
        t = pl.program_id(1)                               # MC pass (reduction axis)

        @pl.when(t == 0)
        def _init():
            mean_ref[...] = jnp.zeros_like(mean_ref)       # running sum
            var_ref[...] = jnp.zeros_like(var_ref)         # running sum of squares

        # ---- MC dropout decided directly on raw uint32 bits ----
        bits = bits_ref[0]                                 # (C_in, tile_m) uint32
        x = x_ref[...]                                     # (C_in, tile_m) f32
        keep = bits >= jnp.uint32(_DROP_THRESHOLD)
        x_drop = jnp.where(keep, x * jnp.float32(_KEEP_SCALE), jnp.float32(0.0))

        # ---- 1x1 conv: K = C_in is tiny, so VPU FMAs instead of the MXU ----
        w = w_ref[...]                                     # (C_out, C_in)
        tile_m = x.shape[1]
        acc = jnp.broadcast_to(b_ref[...], (c_out, tile_m))  # bias init (once/pass)
        for ci in range(w.shape[1]):                       # static, small (C_in)
            acc = acc + w[:, ci:ci + 1] * x_drop[ci:ci + 1, :]
        s = jax.nn.sigmoid(acc)                            # sigmoid(model(x)), EUP

        # ---- running accumulators (no (T, M, C) stack) ----
        mean_ref[...] += s
        var_ref[...] += s * s

        # ---- finalize: mean & unbiased variance on the last pass ----
        @pl.when(t == forward_passes - 1)
        def _finalize():
            ssum = mean_ref[...]
            ssq = var_ref[...]
            mean = ssum * inv_t
            var = (ssq - ssum * ssum * inv_t) * inv_tm1
            mean_ref[...] = mean
            var_ref[...] = jnp.maximum(var, 0.0)           # clamp f32 rounding

    return mcd_kernel


def mcd_forward(x_nchw, w, b, *, forward_passes, seed=0, tile_m=256):
    n, c_in, h, wd = x_nchw.shape
    c_out, c_in_w = w.shape
    assert c_in_w == c_in
    m = n * h * wd

    # Layout plumbing in the wrapper (free): pixels -> lane axis.
    x2d = jnp.transpose(x_nchw, (1, 0, 2, 3)).reshape(c_in, m).astype(jnp.float32)

    tile_m = min(tile_m, max(128, pl.cdiv(m, 128) * 128))
    tile_m = pl.cdiv(tile_m, 128) * 128                    # lane-aligned tile
    m_pad = pl.cdiv(m, tile_m) * tile_m
    if m_pad != m:
        x2d = jnp.pad(x2d, ((0, 0), (0, m_pad - m)))

    # Host-side PRNG bits per pass; dropout decision happens in-kernel.
    bits = jax.random.bits(jax.random.PRNGKey(seed),
                           (forward_passes, c_in, m_pad), dtype=jnp.uint32)

    w2d = w.astype(jnp.float32)
    b_col = b.reshape(c_out, 1).astype(jnp.float32)

    n_m_tiles = m_pad // tile_m
    kernel = _make_mcd_kernel(forward_passes, c_out)

    mean2d, var2d = pl.pallas_call(
        kernel,
        grid=(n_m_tiles, forward_passes),                  # M parallel, passes last
        in_specs=[
            pl.BlockSpec((1, c_in, tile_m), lambda mi, t: (t, 0, mi)),  # bits
            pl.BlockSpec((c_in, tile_m), lambda mi, t: (0, mi)),        # x
            pl.BlockSpec((c_out, c_in), lambda mi, t: (0, 0)),          # w
            pl.BlockSpec((c_out, 1), lambda mi, t: (0, 0)),             # b
        ],
        out_specs=[
            pl.BlockSpec((c_out, tile_m), lambda mi, t: (0, mi)),       # mean (sum acc)
            pl.BlockSpec((c_out, tile_m), lambda mi, t: (0, mi)),       # var (sumsq acc)
        ],
        out_shape=(
            jax.ShapeDtypeStruct((c_out, m_pad), jnp.float32),
            jax.ShapeDtypeStruct((c_out, m_pad), jnp.float32),
        ),
        compiler_params=pltpu.CompilerParams(
            dimension_semantics=("parallel", "arbitrary"),
            vmem_limit_bytes=32 * 1024 * 1024,
        ),
    )(bits, x2d, w2d, b_col)

    mean2d = mean2d[:, :m]
    var2d = var2d[:, :m]

    # Global min-max normalization stays in XLA so kernel tiles are independent.
    vmin = jnp.min(var2d)
    vmax = jnp.max(var2d)
    nvar2d = jnp.where(vmax > vmin, (var2d - vmin) / (vmax - vmin),
                       jnp.zeros_like(var2d))
    # TODO(synk): torch casts variance to float64 (.double()); stays float32 on TPU.

    mean = jnp.transpose(mean2d.reshape(c_out, n, h, wd), (1, 0, 2, 3))
    nvar = jnp.transpose(nvar2d.reshape(c_out, n, h, wd), (1, 0, 2, 3))
    return mean, nvar


if __name__ == "__main__":
    key = jax.random.PRNGKey(0)
    kx, kw, kb = jax.random.split(key, 3)

    N, C_IN, H, W = 2, 4, 16, 16
    C_OUT = 8
    FORWARD_PASSES = 5

    x = jax.random.normal(kx, (N, C_IN, H, W), dtype=jnp.float32)
    w = jax.random.normal(kw, (C_OUT, C_IN), dtype=jnp.float32) * 0.1
    b = jax.random.normal(kb, (C_OUT,), dtype=jnp.float32) * 0.1

    mean, normalized_variance = mcd_forward(
        x, w, b, forward_passes=FORWARD_PASSES, seed=0)
    jax.block_until_ready((mean, normalized_variance))

    assert mean.shape == (N, C_OUT, H, W)
    assert normalized_variance.shape == (N, C_OUT, H, W)
    assert bool(jnp.all(jnp.isfinite(mean)))
    assert bool(jnp.all(jnp.isfinite(normalized_variance)))
    print("KERNEL_OK")
</pallas_src>

<mosaic_0001>
module attributes {stable_mosaic.version = 11 : i64} {
  func.func @mcd_kernel(%arg0: i32, %arg1: i32, %arg2: memref<1x4x256xi32, #tpu.memory_space<vmem>>, %arg3: memref<4x256xf32, #tpu.memory_space<vmem>>, %arg4: memref<8x4xf32, #tpu.memory_space<vmem>>, %arg5: memref<8x1xf32, #tpu.memory_space<vmem>>, %arg6: memref<8x256xf32, #tpu.memory_space<vmem>>, %arg7: memref<8x256xf32, #tpu.memory_space<vmem>>) attributes {dimension_semantics = [#tpu.dimension_semantics<parallel>, #tpu.dimension_semantics<arbitrary>], iteration_bounds = array<i64: 2, 5>, scalar_prefetch = 0 : i64, scratch_operands = 0 : i64, tpu.core_type = #tpu.core_type<tc>, window_params = [{transform_indices = @transform_0, window_bounds = array<i64: 1, 4, 256>}, {transform_indices = @transform_1, window_bounds = array<i64: 4, 256>}, {pipeline_mode = #tpu.pipeline_mode<synchronous>, transform_indices = @transform_2, window_bounds = array<i64: 8, 4>}, {pipeline_mode = #tpu.pipeline_mode<synchronous>, transform_indices = @transform_3, window_bounds = array<i64: 8, 1>}, {transform_indices = @transform_4, window_bounds = array<i64: 8, 256>}, {transform_indices = @transform_5, window_bounds = array<i64: 8, 256>}]} {
    %c0_i32 = arith.constant 0 : i32
    %0 = arith.cmpi eq, %arg1, %c0_i32 : i32
    %1 = arith.extui %0 : i1 to i32
    %c0_i32_0 = arith.constant 0 : i32
    %2 = arith.cmpi ne, %1, %c0_i32_0 : i32
    scf.if %2 {
      %cst_20 = arith.constant 0.000000e+00 : f32
      %55 = vector.broadcast %cst_20 : f32 to vector<8x256xf32>
      %c0_21 = arith.constant 0 : index
      %c0_22 = arith.constant 0 : index
      %56 = vector.load %arg6[%c0_21, %c0_22] : memref<8x256xf32, #tpu.memory_space<vmem>>, vector<8x256xf32>
      tpu.vector_store %arg6[%c0_21, %c0_22], %55 {strides = array<i32>} : memref<8x256xf32, #tpu.memory_space<vmem>>, vector<8x256xf32>,
      %cst_23 = arith.constant 0.000000e+00 : f32
      %57 = vector.broadcast %cst_23 : f32 to vector<8x256xf32>
      %c0_24 = arith.constant 0 : index
      %c0_25 = arith.constant 0 : index
      %58 = vector.load %arg7[%c0_24, %c0_25] : memref<8x256xf32, #tpu.memory_space<vmem>>, vector<8x256xf32>
      tpu.vector_store %arg7[%c0_24, %c0_25], %57 {strides = array<i32>} : memref<8x256xf32, #tpu.memory_space<vmem>>, vector<8x256xf32>,
    } else {
    }
    %c0 = arith.constant 0 : index
    %c0_1 = arith.constant 0 : index
    %c0_2 = arith.constant 0 : index
    %3 = vector.load %arg2[%c0, %c0_1, %c0_2] : memref<1x4x256xi32, #tpu.memory_space<vmem>>, vector<1x4x256xi32>
    %4 = vector.shape_cast %3 : vector<1x4x256xi32> to vector<4x256xi32>
    %c0_3 = arith.constant 0 : index
    %c0_4 = arith.constant 0 : index
    %5 = vector.load %arg3[%c0_3, %c0_4] : memref<4x256xf32, #tpu.memory_space<vmem>>, vector<4x256xf32>
    %c-2147483648_i32 = arith.constant -2147483648 : i32
    %6 = vector.broadcast %c-2147483648_i32 : i32 to vector<4x256xi32>
    %7 = arith.cmpi uge, %4, %6 : vector<4x256xi32>
    %cst = arith.constant 2.000000e+00 : f32
    %8 = vector.broadcast %cst : f32 to vector<4x256xf32>
    %9 = arith.mulf %5, %8 : vector<4x256xf32>
    %cst_5 = arith.constant 0.000000e+00 : f32
    %10 = vector.broadcast %cst_5 : f32 to vector<4x256xf32>
    %11 = arith.select %7, %9, %10 : vector<4x256xi1>, vector<4x256xf32>
    %c0_6 = arith.constant 0 : index
    %c0_7 = arith.constant 0 : index
    %12 = vector.load %arg4[%c0_6, %c0_7] : memref<8x4xf32, #tpu.memory_space<vmem>>, vector<8x4xf32>
    %c0_8 = arith.constant 0 : index
    %c0_9 = arith.constant 0 : index
    %13 = vector.load %arg5[%c0_8, %c0_9] : memref<8x1xf32, #tpu.memory_space<vmem>>, vector<8x1xf32>
    %14 = vector.shape_cast %13 : vector<8x1xf32> to vector<8x1xf32>
    %15 = vector.broadcast %14 : vector<8x1xf32> to vector<8x256xf32>
    %16 = vector.extract_strided_slice %12 {offsets = [0, 0], sizes = [8, 1], strides = [1, 1]} : vector<8x4xf32> to vector<8x1xf32>
    %17 = vector.extract_strided_slice %11 {offsets = [0, 0], sizes = [1, 256], strides = [1, 1]} : vector<4x256xf32> to vector<1x256xf32>
    %18 = vector.broadcast %16 : vector<8x1xf32> to vector<8x256xf32>
    %19 = vector.broadcast %17 : vector<1x256xf32> to vector<8x256xf32>
    %20 = arith.mulf %18, %19 : vector<8x256xf32>
    %21 = arith.addf %15, %20 : vector<8x256xf32>
    %22 = vector.extract_strided_slice %12 {offsets = [0, 1], sizes = [8, 1], strides = [1, 1]} : vector<8x4xf32> to vector<8x1xf32>
    %23 = vector.extract_strided_slice %11 {offsets = [1, 0], sizes = [1, 256], strides = [1, 1]} : vector<4x256xf32> to vector<1x256xf32>
    %24 = vector.broadcast %22 : vector<8x1xf32> to vector<8x256xf32>
    %25 = vector.broadcast %23 : vector<1x256xf32> to vector<8x256xf32>
    %26 = arith.mulf %24, %25 : vector<8x256xf32>
    %27 = arith.addf %21, %26 : vector<8x256xf32>
    %28 = vector.extract_strided_slice %12 {offsets = [0, 2], sizes = [8, 1], strides = [1, 1]} : vector<8x4xf32> to vector<8x1xf32>
    %29 = vector.extract_strided_slice %11 {offsets = [2, 0], sizes = [1, 256], strides = [1, 1]} : vector<4x256xf32> to vector<1x256xf32>
    %30 = vector.broadcast %28 : vector<8x1xf32> to vector<8x256xf32>
    %31 = vector.broadcast %29 : vector<1x256xf32> to vector<8x256xf32>
    %32 = arith.mulf %30, %31 : vector<8x256xf32>
    %33 = arith.addf %27, %32 : vector<8x256xf32>
    %34 = vector.extract_strided_slice %12 {offsets = [0, 3], sizes = [8, 1], strides = [1, 1]} : vector<8x4xf32> to vector<8x1xf32>
    %35 = vector.extract_strided_slice %11 {offsets = [3, 0], sizes = [1, 256], strides = [1, 1]} : vector<4x256xf32> to vector<1x256xf32>
    %36 = vector.broadcast %34 : vector<8x1xf32> to vector<8x256xf32>
    %37 = vector.broadcast %35 : vector<1x256xf32> to vector<8x256xf32>
    %38 = arith.mulf %36, %37 : vector<8x256xf32>
    %39 = arith.addf %33, %38 : vector<8x256xf32>
    %40 = arith.negf %39 : vector<8x256xf32>
    %41 = math.exp %40 : vector<8x256xf32>
    %cst_10 = arith.constant 1.000000e+00 : f32
    %42 = vector.broadcast %cst_10 : f32 to vector<8x256xf32>
    %43 = arith.addf %42, %41 : vector<8x256xf32>
    %44 = arith.divf %42, %43 : vector<8x256xf32>
    %c0_11 = arith.constant 0 : index
    %c0_12 = arith.constant 0 : index
    %45 = vector.load %arg6[%c0_11, %c0_12] : memref<8x256xf32, #tpu.memory_space<vmem>>, vector<8x256xf32>
    %46 = arith.addf %45, %44 : vector<8x256xf32>
    %c0_13 = arith.constant 0 : index
    %c0_14 = arith.constant 0 : index
    %47 = vector.load %arg6[%c0_13, %c0_14] : memref<8x256xf32, #tpu.memory_space<vmem>>, vector<8x256xf32>
    tpu.vector_store %arg6[%c0_13, %c0_14], %46 {strides = array<i32>} : memref<8x256xf32, #tpu.memory_space<vmem>>, vector<8x256xf32>,
    %c0_15 = arith.constant 0 : index
    %c0_16 = arith.constant 0 : index
    %48 = vector.load %arg7[%c0_15, %c0_16] : memref<8x256xf32, #tpu.memory_space<vmem>>, vector<8x256xf32>
    %49 = arith.mulf %44, %44 : vector<8x256xf32>
    %50 = arith.addf %48, %49 : vector<8x256xf32>
    %c0_17 = arith.constant 0 : index
    %c0_18 = arith.constant 0 : index
    %51 = vector.load %arg7[%c0_17, %c0_18] : memref<8x256xf32, #tpu.memory_space<vmem>>, vector<8x256xf32>
    tpu.vector_store %arg7[%c0_17, %c0_18], %50 {strides = array<i32>} : memref<8x256xf32, #tpu.memory_space<vmem>>, vector<8x256xf32>,
    %c4_i32 = arith.constant 4 : i32
    %52 = arith.cmpi eq, %arg1, %c4_i32 : i32
    %53 = arith.extui %52 : i1 to i32
    %c0_i32_19 = arith.constant 0 : i32
    %54 = arith.cmpi ne, %53, %c0_i32_19 : i32
    scf.if %54 {
      %c0_20 = arith.constant 0 : index
      %c0_21 = arith.constant 0 : index
      %55 = vector.load %arg6[%c0_20, %c0_21] : memref<8x256xf32, #tpu.memory_space<vmem>>, vector<8x256xf32>
      %c0_22 = arith.constant 0 : index
      %c0_23 = arith.constant 0 : index
      %56 = vector.load %arg7[%c0_22, %c0_23] : memref<8x256xf32, #tpu.memory_space<vmem>>, vector<8x256xf32>
      %cst_24 = arith.constant 2.000000e-01 : f32
      %57 = vector.broadcast %cst_24 : f32 to vector<8x256xf32>
      %58 = arith.mulf %55, %57 : vector<8x256xf32>
      %59 = arith.mulf %55, %55 : vector<8x256xf32>
      %cst_25 = arith.constant 2.000000e-01 : f32
      %60 = vector.broadcast %cst_25 : f32 to vector<8x256xf32>
      %61 = arith.mulf %59, %60 : vector<8x256xf32>
      %62 = arith.subf %56, %61 : vector<8x256xf32>
      %cst_26 = arith.constant 2.500000e-01 : f32
      %63 = vector.broadcast %cst_26 : f32 to vector<8x256xf32>
      %64 = arith.mulf %62, %63 : vector<8x256xf32>
      %c0_27 = arith.constant 0 : index
      %c0_28 = arith.constant 0 : index
      %65 = vector.load %arg6[%c0_27, %c0_28] : memref<8x256xf32, #tpu.memory_space<vmem>>, vector<8x256xf32>
      tpu.vector_store %arg6[%c0_27, %c0_28], %58 {strides = array<i32>} : memref<8x256xf32, #tpu.memory_space<vmem>>, vector<8x256xf32>,
      %cst_29 = arith.constant 0.000000e+00 : f32
      %66 = vector.broadcast %cst_29 : f32 to vector<8x256xf32>
      %67 = arith.maximumf %64, %66 : vector<8x256xf32>
      %c0_30 = arith.constant 0 : index
      %c0_31 = arith.constant 0 : index
      %68 = vector.load %arg7[%c0_30, %c0_31] : memref<8x256xf32, #tpu.memory_space<vmem>>, vector<8x256xf32>
      tpu.vector_store %arg7[%c0_30, %c0_31], %67 {strides = array<i32>} : memref<8x256xf32, #tpu.memory_space<vmem>>, vector<8x256xf32>,
    } else {
    }
    return
  }
  func.func @transform_0(%arg0: i32, %arg1: i32) -> (i32, i32, i32) {
    %c0_i32 = arith.constant 0 : i32
    %c0_i32_0 = arith.constant 0 : i32
    return %arg1, %c0_i32, %arg0 : i32, i32, i32
  }
  func.func @transform_1(%arg0: i32, %arg1: i32) -> (i32, i32) {
    %c0_i32 = arith.constant 0 : i32
    %c0_i32_0 = arith.constant 0 : i32
    return %c0_i32, %arg0 : i32, i32
  }
  func.func @transform_2(%arg0: i32, %arg1: i32) -> (i32, i32) {
    %c0_i32 = arith.constant 0 : i32
    %c0_i32_0 = arith.constant 0 : i32
    %c0_i32_1 = arith.constant 0 : i32
    return %c0_i32, %c0_i32_0 : i32, i32
  }
  func.func @transform_3(%arg0: i32, %arg1: i32) -> (i32, i32) {
    %c0_i32 = arith.constant 0 : i32
    %c0_i32_0 = arith.constant 0 : i32
    %c0_i32_1 = arith.constant 0 : i32
    return %c0_i32, %c0_i32_0 : i32, i32
  }
  func.func @transform_4(%arg0: i32, %arg1: i32) -> (i32, i32) {
    %c0_i32 = arith.constant 0 : i32
    %c0_i32_0 = arith.constant 0 : i32
    return %c0_i32, %arg0 : i32, i32
  }
  func.func @transform_5(%arg0: i32, %arg1: i32) -> (i32, i32) {
    %c0_i32 = arith.constant 0 : i32
    %c0_i32_0 = arith.constant 0 : i32
    return %c0_i32, %arg0 : i32, i32
  }
}

</mosaic_0001>

<llo_original>
// kernel: tpu_custom_call.1
$region0: #{tpu_custom_call.1}
  #allocation0 [shape = 'u32[]', space=smem, size = 0x4, offset = 0x4, fixed_abs, tag = 'smem constant byte address 0x4 - core index']
  #allocation1 [shape = 'u32[72,128]{1,0:T(1,128)}', space=vmem, size = 0x9000, scoped, tag = 'internal scratch']
  %s0 = inlined_call_operand.hbm [shape: u32[5,4,512], index: 0, kind: input, shape index: {}]
  %s1 = inlined_call_operand.vmem [shape: f32[4,512], index: 1, kind: input, shape index: {}]
  %s2 = inlined_call_operand.vmem [shape: f32[8,4], index: 2, kind: input, shape index: {}]
  %s3 = inlined_call_operand.vmem [shape: f32[8,1], index: 3, kind: input, shape index: {}]
  %s4 = inlined_call_operand.hbm [shape: f32[8,512], index: 4, kind: output, shape index: {0}]
  %s5 = inlined_call_operand.hbm [shape: f32[8,512], index: 5, kind: output, shape index: {1}]
  %6 = xla_tuple %s4, %s5
  %s7 = sld [smem:[#allocation0]]
  $region69: #{tpu_custom_call.1} parent=0
    _
  %s9 = ssub.s32 1, %s7
  %s10 = scalar_select 0, %s9, %s7
  $region1: #{tpu_custom_call.1} parent=0
    #allocation2 [shape = 'u8[8192]{0}', space=vmem, size = 0x2000, scoped, tag = 'input window, operand 0']
    #allocation3 [shape = 's32[2]{0}', space=sflag, size = 0x8, scoped, tag = 'scoped memory for tpu_custom_call.1']
    #allocation4 [shape = 's32[2]{0}', space=sflag, size = 0x8, scoped, tag = 'scoped memory for tpu_custom_call.1']
    #allocation5 [shape = 'u8[16384]{0}', space=vmem, size = 0x4000, scoped, tag = 'output window, operand 0']
    #allocation6 [shape = 'u8[16384]{0}', space=vmem, size = 0x4000, scoped, tag = 'output window, operand 1']
    #allocation7 [shape = 's32[2]{0}', space=sflag, size = 0x8, scoped, tag = 'scoped memory for tpu_custom_call.1']
    %11 = vsyncpa [#allocation3], 0
    %s12 = scalar_lea.sflag [#allocation3], 1
    %13 = vsyncpa %s12, 0
    %14 = vsyncpa [#allocation4], 0
    %s15 = scalar_lea.sflag [#allocation4], 1
    %16 = vsyncpa %s15, 0
    %17 = vsyncpa [#allocation7], 0
    %s18 = scalar_lea.sflag [#allocation7], 1
    %19 = vsyncpa %s18, 0
    loop: start=0, step=1, limit=12
    $region2: #{tpu_custom_call.1} parent=1 // loop_pre_header
      _
    $region3: #{tpu_custom_call.1} parent=1 // loop_header
      %s21 = sphi 0, %s25
      %p22 = scmp.ge.s32.totalorder %s21, 12
      %s28 = sphi 0, %s40
      %s29 = sphi 0, %s36
      %s30 = sphi 0, %s28
      %s31 = sphi 0, %s29
      %s32 = sphi 0, %s30
      %s33 = sphi 0, %s31
      %s45 = sphi 0, %s47
      %s48 = sphi 0, %s45
      %s49 = sphi 0, %s48
      %s65 = sphi 0, %s49
      %s71 = sphi 0, %s73
      %s74 = sphi 0, %s71
      %s75 = sphi 0, %s74
      %s91 = sphi 0, %s75
      %s95 = sphi 0, %s95
      %s97 = sphi 0, %s95
      %s98 = sphi 0, %s97
      %s112 = sphi 0, %s98
      %s116 = sphi 0, %s116
      %s118 = sphi 0, %s116
      %s119 = sphi 0, %s118
      %s133 = sphi 0, %s119
      %s139 = sphi 0, %s141
      %s142 = sphi 0, %s139
      %s143 = sphi 0, %s142
      %s159 = sphi 0, %s143
      %s165 = sphi 0, %s167
      %s168 = sphi 0, %s165
      %s169 = sphi 0, %s168
      %s185 = sphi 0, %s169
    $region4: #{tpu_custom_call.1} parent=1 // loop_header_branch
      %24 = sbr.rel (%p22) target = $region8
    $region5: #{tpu_custom_call.1} parent=1 // loop_body
      %s26 = ssub.s32 %s21, 1
      %s27 = ssub.s32 %s21, 2
      %s34 = sadd.s32 1, %s29
      %p35 = scmp.ge.s32.totalorder %s34, 5
      %s36 = scalar_select %p35, 0, %s34
      %s37 = sadd.s32 1, %s28
      %s38 = scalar_select %p35, %s37, %s28
      %p39 = scmp.ge.s32.totalorder %s38, 2
      %s40 = scalar_select %p39, 0, %s38
      %s41 = ssub.s32 %s29, %s36
      %s42 = ssub.s32 %s28, %s40
      %s43 = sor.u32 %s41, %s42
      %p44 = scmp.eq.s32.totalorder %s43, 0
      %s46 = sadd.s32 %s45, 1
      %s47 = scalar_select %p44, %s45, %s46
      %p50 = pneg %p44
      %p51 = scmp.eq.s32.totalorder %s21, 9
      %p52 = por %p50, %p51
      %p53 = scmp.ne.s32.totalorder %s45, %s48
      %p54 = scmp.eq.s32.totalorder %s21, 0
      %p55 = por %p53, %p54
      %p56 = scmp.ne.s32.totalorder %s45, %s48
      %p57 = scmp.eq.s32.totalorder %s26, 9
      %p58 = por %p56, %p57
      %p59 = scmp.ne.s32.totalorder %s48, %s49
      %p60 = scmp.eq.s32.totalorder %s26, 0
      %p61 = por %p59, %p60
      %p62 = scmp.ne.s32.totalorder %s48, %s49
      %p63 = scmp.eq.s32.totalorder %s27, 9
      %p64 = por %p62, %p63
      %p66 = scmp.ne.s32.totalorder %s49, %s65
      %p67 = scmp.eq.s32.totalorder %s27, 0
      %p68 = por %p66, %p67
      %s69 = ssub.s32 %s28, %s40
      %p70 = scmp.eq.s32.totalorder %s69, 0
      %s72 = sadd.s32 %s71, 1
      %s73 = scalar_select %p70, %s71, %s72
      %p76 = pneg %p70
      %p77 = scmp.eq.s32.totalorder %s21, 9
      %p78 = por %p76, %p77
      %p79 = scmp.ne.s32.totalorder %s71, %s74
      %p80 = scmp.eq.s32.totalorder %s21, 0
      %p81 = por %p79, %p80
      %p82 = scmp.ne.s32.totalorder %s71, %s74
      %p83 = scmp.eq.s32.totalorder %s26, 9
      %p84 = por %p82, %p83
      %p85 = scmp.ne.s32.totalorder %s74, %s75
      %p86 = scmp.eq.s32.totalorder %s26, 0
      %p87 = por %p85, %p86
      %p88 = scmp.ne.s32.totalorder %s74, %s75
      %p89 = scmp.eq.s32.totalorder %s27, 9
      %p90 = por %p88, %p89
      %p92 = scmp.ne.s32.totalorder %s75, %s91
      %p93 = scmp.eq.s32.totalorder %s27, 0
      %p94 = por %p92, %p93
      %s96 = sadd.s32 %s95, 1
      %p99 = scmp.eq.s32.totalorder %s21, 9
      %p100 = scmp.ne.s32.totalorder %s95, %s97
      %p101 = scmp.eq.s32.totalorder %s21, 0
      %p102 = por %p100, %p101
      %p103 = scmp.ne.s32.totalorder %s95, %s97
      %p104 = scmp.eq.s32.totalorder %s26, 9
      %p105 = por %p103, %p104
      %p106 = scmp.ne.s32.totalorder %s97, %s98
      %p107 = scmp.eq.s32.totalorder %s26, 0
      %p108 = por %p106, %p107
      %p109 = scmp.ne.s32.totalorder %s97, %s98
      %p110 = scmp.eq.s32.totalorder %s27, 9
      %p111 = por %p109, %p110
      %p113 = scmp.ne.s32.totalorder %s98, %s112
      %p114 = scmp.eq.s32.totalorder %s27, 0
      %p115 = por %p113, %p114
      %s117 = sadd.s32 %s116, 1
      %p120 = scmp.eq.s32.totalorder %s21, 9
      %p121 = scmp.ne.s32.totalorder %s116, %s118
      %p122 = scmp.eq.s32.totalorder %s21, 0
      %p123 = por %p121, %p122
      %p124 = scmp.ne.s32.totalorder %s116, %s118
      %p125 = scmp.eq.s32.totalorder %s26, 9
      %p126 = por %p124, %p125
      %p127 = scmp.ne.s32.totalorder %s118, %s119
      %p128 = scmp.eq.s32.totalorder %s26, 0
      %p129 = por %p127, %p128
      %p130 = scmp.ne.s32.totalorder %s118, %s119
      %p131 = scmp.eq.s32.totalorder %s27, 9
      %p132 = por %p130, %p131
      %p134 = scmp.ne.s32.totalorder %s119, %s133
      %p135 = scmp.eq.s32.totalorder %s27, 0
      %p136 = por %p134, %p135
      %s137 = ssub.s32 %s28, %s40
      %p138 = scmp.eq.s32.totalorder %s137, 0
      %s140 = sadd.s32 %s139, 1
      %s141 = scalar_select %p138, %s139, %s140
      %p144 = pneg %p138
      %p145 = scmp.eq.s32.totalorder %s21, 9
      %p146 = por %p144, %p145
      %p147 = scmp.ne.s32.totalorder %s139, %s142
      %p148 = scmp.eq.s32.totalorder %s21, 0
      %p149 = por %p147, %p148
      %p150 = scmp.ne.s32.totalorder %s139, %s142
      %p151 = scmp.eq.s32.totalorder %s26, 9
      %p152 = por %p150, %p151
      %p153 = scmp.ne.s32.totalorder %s142, %s143
      %p154 = scmp.eq.s32.totalorder %s26, 0
      %p155 = por %p153, %p154
      %p156 = scmp.ne.s32.totalorder %s142, %s143
      %p157 = scmp.eq.s32.totalorder %s27, 9
      %p158 = por %p156, %p157
      %p160 = scmp.ne.s32.totalorder %s143, %s159
      %p161 = scmp.eq.s32.totalorder %s27, 0
      %p162 = por %p160, %p161
      %s163 = ssub.s32 %s28, %s40
      %p164 = scmp.eq.s32.totalorder %s163, 0
      %s166 = sadd.s32 %s165, 1
      %s167 = scalar_select %p164, %s165, %s166
      %p170 = pneg %p164
      %p171 = scmp.eq.s32.totalorder %s21, 9
      %p172 = por %p170, %p171
      %p173 = scmp.ne.s32.totalorder %s165, %s168
      %p174 = scmp.eq.s32.totalorder %s21, 0
      %p175 = por %p173, %p174
      %p176 = scmp.ne.s32.totalorder %s165, %s168
      %p177 = scmp.eq.s32.totalorder %s26, 9
      %p178 = por %p176, %p177
      %p179 = scmp.ne.s32.totalorder %s168, %s169
      %p180 = scmp.eq.s32.totalorder %s26, 0
      %p181 = por %p179, %p180
      %p182 = scmp.ne.s32.totalorder %s168, %s169
      %p183 = scmp.eq.s32.totalorder %s27, 9
      %p184 = por %p182, %p183
      %p186 = scmp.ne.s32.totalorder %s169, %s185
      %p187 = scmp.eq.s32.totalorder %s27, 0
      %p188 = por %p186, %p187
      %p189 = scmp.le.s32.totalorder 1, %s21
      %p190 = scmp.lt.s32.totalorder %s21, 11
      %p191 = pnand %p189, %p190
      %p192 = pneg %p191
      // Predicated region
      $region9: #{tpu_custom_call.1} parent=5 // pred_check
        _
      $region10: #{tpu_custom_call.1} parent=5 // pred_check_branch
        %194 = sbr.rel (%p191) target = $region12
      $region11: #{tpu_custom_call.1} parent=5 // pred_region
        %s195 = ssub.s32 %s21, 1
        // Predicated region
        $region13: #{tpu_custom_call.1} parent=11 // pred_check
          %p196 = pneg %p108
        $region14: #{tpu_custom_call.1} parent=11 // pred_check_branch
          %198 = sbr.rel (%p196) target = $region16
        $region15: #{tpu_custom_call.1} parent=11 // pred_region
          _
        $region16: #{tpu_custom_call.1} parent=11 // pred_fallthru
          _
        // Predicated region
        $region17: #{tpu_custom_call.1} parent=11 // pred_check
          %p199 = pneg %p129
        $region18: #{tpu_custom_call.1} parent=11 // pred_check_branch
          %201 = sbr.rel (%p199) target = $region20
        $region19: #{tpu_custom_call.1} parent=11 // pred_region
          _
        $region20: #{tpu_custom_call.1} parent=11 // pred_fallthru
          _
      $region12: #{tpu_custom_call.1} parent=5 // pred_fallthru
        _
      %p202 = scmp.lt.s32.totalorder %s21, 10
      // Predicated region
      $region21: #{tpu_custom_call.1} parent=5 // pred_check
        %p203 = pneg %p202
      $region22: #{tpu_custom_call.1} parent=5 // pred_check_branch
        %205 = sbr.rel (%p203) target = $region24
      $region23: #{tpu_custom_call.1} parent=5 // pred_region
        // Predicated region
        $region25: #{tpu_custom_call.1} parent=23 // pred_check
          %p206 = pneg %p55
        $region26: #{tpu_custom_call.1} parent=23 // pred_check_branch
          %208 = sbr.rel (%p206) target = $region28
        $region27: #{tpu_custom_call.1} parent=23 // pred_region
          %s209 = sand.u32 %s45, 1
          %s210 = scalar_lea.sflag [#allocation3], %s209
          %s211 = sand.u32 %s45, 1
          %s212 = smul.addr %s211, 8
          %s213 = scalar_lea.vmem [#allocation2], %s212
          %s214 = smul.u32 2, %s28
          %216 = vsyncadd %s210, 0
          %s217 = smul.addr %s29, 4
          %s218 = sadd.s32 %s214, %s217
          %s219 = smul.addr %s218, 4
          %s220 = scalar_lea.hbm %s0, %s219
          %s222 = sshll.u32 %s220, 4
          %s223 = int_to_ptr.hbm [resolvable:$true] %s222
          %s224 = sshll.u32 %s213, 4
          %s225 = int_to_ptr.vmem [resolvable:$true] %s224
          %227 = dma.hbm_to_vmem [thread:$0]  %s223, 128, %s225, %s210
        $region28: #{tpu_custom_call.1} parent=23 // pred_fallthru
          _
        // Predicated region
        $region29: #{tpu_custom_call.1} parent=23 // pred_check
          %p228 = pneg %p81
        $region30: #{tpu_custom_call.1} parent=23 // pred_check_branch
          %230 = sbr.rel (%p228) target = $region32
        $region31: #{tpu_custom_call.1} parent=23 // pred_region
          %s231 = smul.u32 2, %s28
          %p232 = scmp.lt.s32.totalorder %s231, 3
          %s233 = scalar_select %p232, %s231, 3
          %s234 = smul.addr %s233, 4
          %s235 = scalar_lea.vmem %s1, %s234
          %s236 = smul.u32 2, %s28
        $region32: #{tpu_custom_call.1} parent=23 // pred_fallthru
          _
      $region24: #{tpu_custom_call.1} parent=5 // pred_fallthru
        _
      %p237 = scmp.le.s32.totalorder 1, %s21
      %p238 = scmp.lt.s32.totalorder %s21, 11
      %p239 = pnand %p237, %p238
      %p240 = pneg %p239
      // Predicated region
      $region33: #{tpu_custom_call.1} parent=5 // pred_check
        _
      $region34: #{tpu_custom_call.1} parent=5 // pred_check_branch
        %242 = sbr.rel (%p239) target = $region36
      $region35: #{tpu_custom_call.1} parent=5 // pred_region
        %s243 = ssub.s32 %s21, 1
        %s244 = sand.u32 %s48, 1
        %s245 = scalar_lea.sflag [#allocation3], %s244
        %s246 = sand.u32 %s48, 1
        %s247 = smul.addr %s246, 8
        %s248 = scalar_lea.vmem [#allocation2], %s247
        // Predicated region
        $region37: #{tpu_custom_call.1} parent=35 // pred_check
          %p249 = pneg %p61
        $region38: #{tpu_custom_call.1} parent=35 // pred_check_branch
          %251 = sbr.rel (%p249) target = $region40
        $region39: #{tpu_custom_call.1} parent=35 // pred_region
          %253 = dma.done %s245, 128
        $region40: #{tpu_custom_call.1} parent=35 // pred_fallthru
          _
        %s254 = sand.u32 %s48, 1
        %s255 = scalar_lea.sflag [#allocation3], %s254
        %s256 = sand.u32 %s48, 1
        %s257 = smul.addr %s256, 8
        %s258 = scalar_lea.vmem [#allocation2], %s257
        %p259 = pneg %p61
        %p260 = pneg %p58
        %s261 = smul.u32 2, %s30
        %p262 = scmp.lt.s32.totalorder %s261, 3
        %s263 = scalar_select %p262, %s261, 3
        %s264 = smul.addr %s263, 4
        %s265 = scalar_lea.vmem %s1, %s264
        %p266 = pneg %p87
        %p267 = pneg %p84
        %p268 = pneg %p108
        %p269 = pneg %p105
        %p270 = pneg %p129
        %p271 = pneg %p126
        %p272 = pneg %p155
        %p273 = pneg %p152
        %s274 = sand.u32 %s142, 1
        %s275 = scalar_lea.sflag [#allocation4], %s274
        %s276 = sand.u32 %s142, 1
        %s277 = smul.addr %s276, 16
        %s278 = scalar_lea.vmem [#allocation5], %s277
        %p279 = pneg %p181
        %p280 = pneg %p178
        %s281 = sand.u32 %s168, 1
        %s282 = scalar_lea.sflag [#allocation7], %s281
        %s283 = sand.u32 %s168, 1
        %s284 = smul.addr %s283, 16
        %s285 = scalar_lea.vmem [#allocation6], %s284
        %s286 = smul.u32 2, %s30
        %s287 = smul.u32 2, %s30
        %p288 = scmp.lt.s32.totalorder %s287, 3
        %s289 = scalar_select %p288, %s287, 3
        %s290 = smul.addr %s289, 4
        %s291 = scalar_lea.vmem %s1, %s290
        %s292 = smul.u32 2, %s30
        %s293 = smul.u32 2, %s30
        %s294 = smul.u32 2, %s30
        %p295 = scmp.eq.s32.totalorder %s31, 0
        // Predicated region
        $region41: #{tpu_custom_call.1} parent=35 // pred_check
          %p296 = pneg %p295
        $region42: #{tpu_custom_call.1} parent=35 // pred_check_branch
          %298 = sbr.rel (%p296) target = $region44
        $region43: #{tpu_custom_call.1} parent=35 // pred_region
          %299 = vst [vmem:[%s278] sm:$0xff] 0.0
          %300 = vst [vmem:[%s278 + $0x8] sm:$0xff] 0.0
          %301 = vst [vmem:[%s285] sm:$0xff] 0.0
          %302 = vst [vmem:[%s285 + $0x8] sm:$0xff] 0.0
        $region44: #{tpu_custom_call.1} parent=35 // pred_fallthru
          _
        %v303 = vld [vmem:[%s248] sm:$0xff]
        %v304 = vld [vmem:[%s291] sm:$0xff]
        %v305 = vadd.s32 %v303, 2147483648
        %vm307 = vcmp.ge.s32.totalorder %v305, 0
        %v308 = vmul.f32 %v304, 2.0
        %v309 = vsel %vm307, %v308, 0.0
        %v310 = vld [vmem:[%s2] sm:$0xff]
        %v311 = vld [vmem:[%s3] sm:$0xff]
        %313 = vset.pattern.permute.xlu0 0
        %314 = vperm.xlu0 %313, %v311
        %v315 = vpop.permute.xlu0 %314
        %318 = vset.pattern.permute.xlu0 0
        %319 = vperm.xlu0 %318, %v310
        %v320 = vpop.permute.xlu0 %319
        %v323 = vperm.slane %v309, 0
        %v324 = vperm.slane %v309, 4
        %v327 = vperm.slane %v323, 0
        %v328 = vperm.slane %v324, 0
        %v329 = vmul.f32 %v320, %v327
        %v330 = vmul.f32 %v320, %v328
        %v331 = vadd.f32 %v315, %v329
        %v332 = vadd.f32 %v315, %v330
        %333 = vset.pattern.permute.xlu0 1
        %334 = vperm.xlu0 %333, %v310
        %v335 = vpop.permute.xlu0 %334
        %v337 = vperm.slane %v309, 1
        %v338 = vperm.slane %v309, 5
        %v341 = vperm.slane %v337, 1
        %v342 = vperm.slane %v338, 1
        %v343 = vmul.f32 %v335, %v341
        %v344 = vmul.f32 %v335, %v342
        %v345 = vadd.f32 %v331, %v343
        %v346 = vadd.f32 %v332, %v344
        %347 = vset.pattern.permute.xlu0 2
        %348 = vperm.xlu0 %347, %v310
        %v349 = vpop.permute.xlu0 %348
        %v351 = vperm.slane %v309, 2
        %v352 = vperm.slane %v309, 6
        %v355 = vperm.slane %v351, 2
        %v356 = vperm.slane %v352, 2
        %v357 = vmul.f32 %v349, %v355
        %v358 = vmul.f32 %v349, %v356
        %v359 = vadd.f32 %v345, %v357
        %v360 = vadd.f32 %v346, %v358
        %361 = vset.pattern.permute.xlu0 3
        %362 = vperm.xlu0 %361, %v310
        %v363 = vpop.permute.xlu0 %362
        %v365 = vperm.slane %v309, 3
        %v366 = vperm.slane %v309, 7
        %v369 = vperm.slane %v365, 3
        %v370 = vperm.slane %v366, 3
        %v371 = vmul.f32 %v363, %v369
        %v372 = vmul.f32 %v363, %v370
        %v373 = vadd.f32 %v359, %v371
        %v374 = vadd.f32 %v360, %v372
        %v375 = vxor.u32 %v373, 2147483648
        %v376 = vxor.u32 %v374, 2147483648
        %v377 = vmul.f32 %v375, 1.442695
        %v378 = vpow.pop %v377
        %v379 = vmul.f32 %v376, 1.442695
        %v380 = vpow.pop %v379
        %v381 = vadd.f32 %v378, 1.0
        %v382 = vadd.f32 %v380, 1.0
        %v383 = vrcp.pop %v381
        %v384 = vmul.f32 %v381, %v383
        %v385 = vsub.f32 1.0, %v384
        %v386 = vmul.f32 %v383, %v385
        %v387 = vadd.f32 %v383, %v386
        %vm388 = vweird.f32 %v381
        %vm389 = vweird.f32 %v383
        %vm390 = vmor %vm388, %vm389
        %v391 = vsel %vm390, %v383, %v387
        %v392 = vand.u32 2147483647, %v381
        %vm393 = vcmp.eq.f32.partialorder %v392, 8.507059e+37
        %v394 = vand.u32 %v381, 2147483648
        %v395 = vor.u32 1.1754944e-38, %v394
        %v396 = vsel %vm393, %v395, %v391
        %v397 = vmul.f32 1.0, %v396
        %v398 = vrcp.pop %v382
        %v399 = vmul.f32 %v382, %v398
        %v400 = vsub.f32 1.0, %v399
        %v401 = vmul.f32 %v398, %v400
        %v402 = vadd.f32 %v398, %v401
        %vm403 = vweird.f32 %v382
        %vm404 = vweird.f32 %v398
        %vm405 = vmor %vm403, %vm404
        %v406 = vsel %vm405, %v398, %v402
        %v407 = vand.u32 2147483647, %v382
        %vm408 = vcmp.eq.f32.partialorder %v407, 8.507059e+37
        %v409 = vand.u32 %v382, 2147483648
        %v410 = vor.u32 1.1754944e-38, %v409
        %v411 = vsel %vm408, %v410, %v406
        %v412 = vmul.f32 1.0, %v411
        %v413 = vld [vmem:[%s278] sm:$0xff]
        %v414 = vld [vmem:[%s278 + $0x8] sm:$0xff]
        %v415 = vadd.f32 %v413, %v397
        %v416 = vadd.f32 %v414, %v412
        %417 = vst [vmem:[%s278] sm:$0xff] %v415
        %418 = vst [vmem:[%s278 + $0x8] sm:$0xff] %v416
        %v419 = vld [vmem:[%s285] sm:$0xff]
        %v420 = vld [vmem:[%s285 + $0x8] sm:$0xff]
        %v421 = vmul.f32 %v397, %v397
        %v422 = vmul.f32 %v412, %v412
        %v423 = vadd.f32 %v419, %v421
        %v424 = vadd.f32 %v420, %v422
        %425 = vst [vmem:[%s285] sm:$0xff] %v423
        %426 = vst [vmem:[%s285 + $0x8] sm:$0xff] %v424
        %p427 = scmp.eq.s32.totalorder %s31, 4
        // Predicated region
        $region45: #{tpu_custom_call.1} parent=35 // pred_check
          %p428 = pneg %p427
        $region46: #{tpu_custom_call.1} parent=35 // pred_check_branch
          %430 = sbr.rel (%p428) target = $region48
        $region47: #{tpu_custom_call.1} parent=35 // pred_region
          %v431 = vld [vmem:[%s278] sm:$0xff]
          %v432 = vld [vmem:[%s278 + $0x8] sm:$0xff]
          %v433 = vld [vmem:[%s285] sm:$0xff]
          %v434 = vld [vmem:[%s285 + $0x8] sm:$0xff]
          %v435 = vmul.f32 %v431, 0.2
          %v436 = vmul.f32 %v432, 0.2
          %v437 = vmul.f32 %v431, %v431
          %v438 = vmul.f32 %v432, %v432
          %v439 = vmul.f32 %v437, 0.2
          %v440 = vmul.f32 %v438, 0.2
          %v441 = vsub.f32 %v433, %v439
          %v442 = vsub.f32 %v434, %v440
          %v443 = vmul.f32 %v441, 0.25
          %v444 = vmul.f32 %v442, 0.25
          %445 = vst [vmem:[%s278] sm:$0xff] %v435
          %446 = vst [vmem:[%s278 + $0x8] sm:$0xff] %v436
          %v447 = vmax.f32 %v443, 0.0
          %v448 = vmax.f32 %v444, 0.0
          %449 = vst [vmem:[%s285] sm:$0xff] %v447
          %450 = vst [vmem:[%s285 + $0x8] sm:$0xff] %v448
        $region48: #{tpu_custom_call.1} parent=35 // pred_fallthru
          _
        %s451 = sand.u32 %s142, 1
        %s452 = scalar_lea.sflag [#allocation4], %s451
        %s453 = sand.u32 %s142, 1
        %s454 = smul.addr %s453, 16
        %s455 = scalar_lea.vmem [#allocation5], %s454
        %s456 = sand.u32 %s168, 1
        %s457 = scalar_lea.sflag [#allocation7], %s456
        %s458 = sand.u32 %s168, 1
        %s459 = smul.addr %s458, 16
        %s460 = scalar_lea.vmem [#allocation6], %s459
        // Predicated region
        $region49: #{tpu_custom_call.1} parent=35 // pred_check
          %p461 = pneg %p152
        $region50: #{tpu_custom_call.1} parent=35 // pred_check_branch
          %463 = sbr.rel (%p461) target = $region52
        $region51: #{tpu_custom_call.1} parent=35 // pred_region
          %s464 = smul.u32 2, %s30
          %466 = vsyncadd %s452, 0
          %s467 = smul.addr %s464, 8
          %s468 = scalar_lea.hbm %s4, %s467
          %s470 = sshll.u32 %s455, 4
          %s471 = int_to_ptr.vmem [resolvable:$true] %s470
          %s472 = sshll.u32 %s468, 4
          %s473 = int_to_ptr.hbm [resolvable:$true] %s472
          %475 = dma.vmem_to_hbm [thread:$0]  %s471, 256, %s473, %s452
        $region52: #{tpu_custom_call.1} parent=35 // pred_fallthru
          _
        // Predicated region
        $region53: #{tpu_custom_call.1} parent=35 // pred_check
          %p476 = pneg %p178
        $region54: #{tpu_custom_call.1} parent=35 // pred_check_branch
          %478 = sbr.rel (%p476) target = $region56
        $region55: #{tpu_custom_call.1} parent=35 // pred_region
          %s479 = smul.u32 2, %s30
          %481 = vsyncadd %s457, 0
          %s482 = smul.addr %s479, 8
          %s483 = scalar_lea.hbm %s5, %s482
          %s485 = sshll.u32 %s460, 4
          %s486 = int_to_ptr.vmem [resolvable:$true] %s485
          %s487 = sshll.u32 %s483, 4
          %s488 = int_to_ptr.hbm [resolvable:$true] %s487
          %490 = dma.vmem_to_hbm [thread:$0]  %s486, 256, %s488, %s457
        $region56: #{tpu_custom_call.1} parent=35 // pred_fallthru
          _
      $region36: #{tpu_custom_call.1} parent=5 // pred_fallthru
        _
      %p491 = scmp.le.s32.totalorder 2, %s21
      // Predicated region
      $region57: #{tpu_custom_call.1} parent=5 // pred_check
        %p492 = pneg %p491
      $region58: #{tpu_custom_call.1} parent=5 // pred_check_branch
        %494 = sbr.rel (%p492) target = $region60
      $region59: #{tpu_custom_call.1} parent=5 // pred_region
        %s495 = ssub.s32 %s21, 2
        // Predicated region
        $region61: #{tpu_custom_call.1} parent=59 // pred_check
          %p496 = pneg %p158
        $region62: #{tpu_custom_call.1} parent=59 // pred_check_branch
          %498 = sbr.rel (%p496) target = $region64
        $region63: #{tpu_custom_call.1} parent=59 // pred_region
          %s499 = sand.u32 %s143, 1
          %s500 = scalar_lea.sflag [#allocation4], %s499
          %s501 = sand.u32 %s143, 1
          %s502 = smul.addr %s501, 16
          %s503 = scalar_lea.vmem [#allocation5], %s502
          %505 = dma.done %s500, 256
        $region64: #{tpu_custom_call.1} parent=59 // pred_fallthru
          _
        // Predicated region
        $region65: #{tpu_custom_call.1} parent=59 // pred_check
          %p506 = pneg %p184
        $region66: #{tpu_custom_call.1} parent=59 // pred_check_branch
          %508 = sbr.rel (%p506) target = $region68
        $region67: #{tpu_custom_call.1} parent=59 // pred_region
          %s509 = sand.u32 %s169, 1
          %s510 = scalar_lea.sflag [#allocation7], %s509
          %s511 = sand.u32 %s169, 1
          %s512 = smul.addr %s511, 16
          %s513 = scalar_lea.vmem [#allocation6], %s512
          %515 = dma.done %s510, 256
        $region68: #{tpu_custom_call.1} parent=59 // pred_fallthru
          _
      $region60: #{tpu_custom_call.1} parent=5 // pred_fallthru
        _
    $region6: #{tpu_custom_call.1} parent=1 // loop_footer
      %s25 = sadd.s32 1, %s21
    $region7: #{tpu_custom_call.1} parent=1 // loop_footer_branch
      %20 = sbr.rel target = $region3
    $region8: #{tpu_custom_call.1} parent=1 // loop_exit
      _
    %516 = vsyncpa [#allocation3], 1
    %s517 = scalar_lea.sflag [#allocation3], 1
    %518 = vsyncpa %s517, 1
    %519 = vsyncpa [#allocation4], 1
    %s520 = scalar_lea.sflag [#allocation4], 1
    %521 = vsyncpa %s520, 1
    %522 = vsyncpa [#allocation7], 1
    %s523 = scalar_lea.sflag [#allocation7], 1
    %524 = vsyncpa %s523, 1

</llo_original>
